<compile_context>
chip_gen: v5e
topology: v5e:2x2
jax: 0.10.0
libtpu: 0.0.40
codegen_flags: <defaults>
</compile_context>

<pallas_src>
import functools

import jax
import jax.numpy as jnp
from jax.experimental import pallas as pl
from jax.experimental.pallas import tpu as pltpu


# ---------------------------------------------------------------------------
# Packed-parameter slab layout: one (rows, 8H) f32 array, every section starts
# on an 8-row boundary (lane sections are at 0 / 4H / 8H, all multiples of 128).
# ---------------------------------------------------------------------------
def _round_up(x, m):
    return (x + m - 1) // m * m


def _slab_layout(E, H):
    r_wih = 0                                  # [wih_f | wih_r]       (E, 8H)
    r_whh = _round_up(r_wih + E, 8)            # whh_f                 (H, 4H)
    r_bl = _round_up(r_whh + H, 8)             # [b_f | b_r]           (1, 8H)
    r_wff = _round_up(r_bl + 1, 8)             # w_ffnn^T              (3E, E)
    r_bff = _round_up(r_wff + 3 * E, 8)        # b_ffnn                (1, E)
    r_wfc = _round_up(r_bff + 1, 8)            # wfc                   (2H, C)
    r_bfc = _round_up(r_wfc + 2 * H, 8)        # bfc                   (1, C)
    rows = _round_up(r_bfc + 1, 8)
    lanes = _round_up(8 * H, 128)
    return dict(wih=r_wih, whh=r_whh, blstm=r_bl, wff=r_wff, bff=r_bff,
                wfc=r_wfc, bfc=r_bfc, rows=rows, lanes=lanes)


# ---------------------------------------------------------------------------
# Fused kernel: FFNN -> hoisted input projection (both dirs) -> forward
# recurrence -> reverse last step -> ReLU -> final Linear. Grid-less, all VMEM.
# ---------------------------------------------------------------------------
def fused_kernel(x_ref, p_ref, o_ref, *, T, E, H, L):
    BP = x_ref.shape[0] // T                   # padded batch (multiple of 8)
    H4 = 4 * H
    OUT = o_ref.shape[1]                       # lane-padded logits width (128)

    # --- slice the packed parameter slab at static, tile-aligned offsets ---
    wff = p_ref[L["wff"]:L["wff"] + 3 * E, 0:E]            # (3E, E)
    bff = p_ref[L["bff"]:L["bff"] + 1, 0:E]                # (1, E)
    wih = p_ref[L["wih"]:L["wih"] + E, :]                  # (E, 8H) = [fwd | rev]
    b_fr = p_ref[L["blstm"]:L["blstm"] + 1, :]             # (1, 8H) = [b_f | b_r]
    whh = p_ref[L["whh"]:L["whh"] + H, 0:H4]               # (H, 4H) forward dir

    # --- FFNN: one matmul over the pre-concatenated (T*BP, 3E) slab + ReLU ---
    x = jnp.dot(x_ref[...], wff, preferred_element_type=jnp.float32) + bff
    x = jnp.maximum(x, 0.0)                                # (T*BP, E)

    # --- hoisted input projection, both directions in ONE 256-lane matmul ---
    gx = jnp.dot(x, wih, preferred_element_type=jnp.float32) + b_fr   # (T*BP, 8H)

    # Gate columns are pre-ordered (i, f, o, g).  sigmoid(x) = 0.5*tanh(x/2)+0.5,
    # so one EUP tanh over all 4H lanes covers every gate via per-lane scale/offset.
    lane = jax.lax.broadcasted_iota(jnp.int32, (1, H4), 1)
    g_scale = jnp.where(lane < 3 * H, 0.5, 1.0)            # tanh input scale
    g_post = jnp.where(lane < 3 * H, 0.5, 1.0)             # output scale
    g_off = jnp.where(lane < 3 * H, 0.5, 0.0)              # output offset

    def cell(gates, c):
        act = jnp.tanh(gates * g_scale) * g_post + g_off   # (BP, 4H), one EUP op
        i = act[:, 0:H]
        f = act[:, H:2 * H]
        o = act[:, 2 * H:3 * H]
        g = act[:, 3 * H:H4]
        c_new = f * c + i * g
        h_new = o * jnp.tanh(c_new)
        return h_new, c_new

    # --- forward recurrence: unrolled; only h @ Whh is on the serial chain ---
    h = jnp.zeros((BP, H), jnp.float32)
    c = jnp.zeros((BP, H), jnp.float32)
    for t in range(T):                                     # T static & small
        gates = gx[t * BP:(t + 1) * BP, 0:H4] + jnp.dot(
            h, whh, preferred_element_type=jnp.float32)
        h, c = cell(gates, c)
    h_fwd = h                                              # == out[:, -1, :H]

    # --- reverse direction: single step on x[:, T-1] from zero state ---
    h_bwd, _ = cell(gx[(T - 1) * BP:T * BP, H4:2 * H4],
                    jnp.zeros((BP, H), jnp.float32))       # == out[:, -1, H:]

    # --- ReLU + final Linear(2H -> C), lane-padded so the store is unmasked ---
    a_f = jnp.maximum(h_fwd, 0.0)
    a_b = jnp.maximum(h_bwd, 0.0)
    wfc = p_ref[L["wfc"]:L["wfc"] + 2 * H, 0:OUT]          # (2H, OUT) zero-padded cols
    bfc = p_ref[L["bfc"]:L["bfc"] + 1, 0:OUT]              # (1, OUT)
    logits = (jnp.dot(a_f, wfc[0:H, :], preferred_element_type=jnp.float32)
              + jnp.dot(a_b, wfc[H:2 * H, :], preferred_element_type=jnp.float32)
              + bfc)
    o_ref[...] = logits                                    # (BP, 128) lane-dense store


# ---------------------------------------------------------------------------
# One-time param prep: gate reorder PyTorch (i,f,g,o) -> (i,f,o,g) and pack
# everything into one (8,128)-aligned VMEM slab.
# ---------------------------------------------------------------------------
def prepare_kernel_params(params):
    E = params["wih_f"].shape[0]
    H = params["whh_f"].shape[0]
    C = params["wfc"].shape[1]
    L = _slab_layout(E, H)

    def reorder(w):  # columns [i | f | g | o] -> [i | f | o | g]
        return jnp.concatenate(
            [w[:, 0:2 * H], w[:, 3 * H:4 * H], w[:, 2 * H:3 * H]], axis=1)

    slab = jnp.zeros((L["rows"], L["lanes"]), jnp.float32)
    slab = slab.at[L["wih"]:L["wih"] + E, 0:4 * H].set(reorder(params["wih_f"]))
    slab = slab.at[L["wih"]:L["wih"] + E, 4 * H:8 * H].set(reorder(params["wih_r"]))
    slab = slab.at[L["whh"]:L["whh"] + H, 0:4 * H].set(reorder(params["whh_f"]))
    slab = slab.at[L["blstm"], 0:4 * H].set(reorder(params["b_f"])[0])
    slab = slab.at[L["blstm"], 4 * H:8 * H].set(reorder(params["b_r"])[0])
    slab = slab.at[L["wff"]:L["wff"] + 3 * E, 0:E].set(params["w_ffnn_t"])
    slab = slab.at[L["bff"], 0:E].set(params["b_ffnn"][0])
    slab = slab.at[L["wfc"]:L["wfc"] + 2 * H, 0:C].set(params["wfc"])
    slab = slab.at[L["bfc"], 0:C].set(params["bfc"][0])
    # Porting note: for real PyTorch weights, b_f / b_r must be b_ih + b_hh.
    return slab


@functools.partial(jax.jit, static_argnames=("H", "C"))
def classifier_lstm3_forward(e0, h1, h2, slab, *, H, C):
    B, T, E = e0.shape
    BP = _round_up(B, 8)                       # sublane-aligned batch
    L = _slab_layout(E, H)
    OUT = 128                                  # lane-padded logits width

    # Wrapper layout plumbing (small HBM copies): concat -> time-major ->
    # batch-pad to 8 -> flatten to a single 2-D slab (one input DMA).
    x = jnp.concatenate([e0, h1, h2], axis=2)              # (B, T, 3E)
    x = jnp.transpose(x, (1, 0, 2))                        # (T, B, 3E)
    x = jnp.pad(x, ((0, 0), (0, BP - B), (0, 0)))          # (T, BP, 3E)
    x = x.reshape(T * BP, 3 * E)

    kernel = functools.partial(fused_kernel, T=T, E=E, H=H, L=L)
    out = pl.pallas_call(
        kernel,
        out_shape=jax.ShapeDtypeStruct((BP, OUT), jnp.float32),
        in_specs=[pl.BlockSpec(memory_space=pltpu.MemorySpace.VMEM)] * 2,
        out_specs=pl.BlockSpec(memory_space=pltpu.MemorySpace.VMEM),
    )(x, slab)
    # NOTE: if batch grows, add a batch grid axis with
    # dimension_semantics=("parallel",) to shard across v7x's two TensorCores.
    return out[:B, :C]


# ---------------------------------------------------------------------------
# Pure-JAX reference (full bidirectional unroll, PyTorch gate order i,f,g,o).
# ---------------------------------------------------------------------------
def reference_forward(e0, h1, h2, params):
    B, T, E = e0.shape
    H = params["whh_f"].shape[0]
    Xc = jnp.concatenate([e0, h1, h2], axis=2)             # (B, T, 3E)
    X = jax.nn.relu(Xc @ params["w_ffnn_t"] + params["b_ffnn"])

    def cell(xt, h, c, wih, whh, b):
        g = xt @ wih + h @ whh + b
        i = jax.nn.sigmoid(g[:, 0 * H:1 * H])
        f = jax.nn.sigmoid(g[:, 1 * H:2 * H])
        gg = jnp.tanh(g[:, 2 * H:3 * H])
        o = jax.nn.sigmoid(g[:, 3 * H:4 * H])
        c = f * c + i * gg
        h = o * jnp.tanh(c)
        return h, c

    hf = jnp.zeros((B, H)); cf = jnp.zeros((B, H))
    out_f = []
    for t in range(T):
        hf, cf = cell(X[:, t, :], hf, cf, params["wih_f"], params["whh_f"], params["b_f"])
        out_f.append(hf)
    hb = jnp.zeros((B, H)); cb = jnp.zeros((B, H))
    out_b = [None] * T
    for t in range(T - 1, -1, -1):
        hb, cb = cell(X[:, t, :], hb, cb, params["wih_r"], params["whh_r"], params["b_r"])
        out_b[t] = hb
    out = jnp.concatenate([jnp.stack(out_f, 1), jnp.stack(out_b, 1)], axis=2)
    out = jax.nn.relu(out)
    return out[:, -1, :] @ params["wfc"] + params["bfc"]


def init_params(key, E, H, C):
    ks = jax.random.split(key, 10)
    u = lambda k, shape, scale: jax.random.uniform(k, shape, jnp.float32, -scale, scale)
    s_lin = 1.0 / jnp.sqrt(3.0 * E)
    s_lstm = 1.0 / jnp.sqrt(float(H))
    s_fc = 1.0 / jnp.sqrt(2.0 * H)
    return {
        # FFNN Linear(3E -> E), stored transposed: (3E, E)
        "w_ffnn_t": u(ks[0], (3 * E, E), s_lin),
        "b_ffnn": u(ks[1], (1, E), s_lin),
        # forward LSTM direction (PyTorch gate order i,f,g,o), transposed
        "wih_f": u(ks[2], (E, 4 * H), s_lstm),
        "whh_f": u(ks[3], (H, 4 * H), s_lstm),
        "b_f": u(ks[4], (1, 4 * H), s_lstm),   # b_ih + b_hh folded together
        # reverse LSTM direction
        "wih_r": u(ks[5], (E, 4 * H), s_lstm),
        "whh_r": u(ks[6], (H, 4 * H), s_lstm),
        "b_r": u(ks[7], (1, 4 * H), s_lstm),
        # final fc Linear(2H -> C), transposed
        "wfc": u(ks[8], (2 * H, C), s_fc),
        "bfc": u(ks[9], (1, C), s_fc),
    }


if __name__ == "__main__":
    B, T, E, H, C = 2, 8, 16, 32, 4
    key = jax.random.PRNGKey(0)
    k_e0, k_h1, k_h2, k_p = jax.random.split(key, 4)
    e0 = jax.random.normal(k_e0, (B, T, E), jnp.float32)
    h1 = jax.random.normal(k_h1, (B, T, E), jnp.float32)
    h2 = jax.random.normal(k_h2, (B, T, E), jnp.float32)
    params = init_params(k_p, E, H, C)          # PyTorch gate order (i,f,g,o)
    slab = prepare_kernel_params(params)        # packed, kernel gate order (i,f,o,g)

    logits = classifier_lstm3_forward(e0, h1, h2, slab, H=H, C=C)
    jax.block_until_ready(logits)

    ref = reference_forward(e0, h1, h2, params)
    assert logits.shape == (B, C)
    assert jnp.allclose(logits, ref, atol=1e-4, rtol=1e-4), "mismatch vs reference"
    print("KERNEL_OK")
</pallas_src>

<mosaic_0001>
module attributes {stable_mosaic.version = 11 : i64} {
  func.func @fused_kernel(%arg0: memref<64x48xf32, #tpu.memory_space<vmem>>, %arg1: memref<184x256xf32, #tpu.memory_space<vmem>>, %arg2: memref<8x128xf32, #tpu.memory_space<vmem>>) attributes {dimension_semantics = [], scalar_prefetch = 0 : i64, scratch_operands = 0 : i64, tpu.core_type = #tpu.core_type<tc>} {
    %c56 = arith.constant 56 : index
    %c0 = arith.constant 0 : index
    %0 = vector.load %arg1[%c56, %c0] : memref<184x256xf32, #tpu.memory_space<vmem>>, vector<48x16xf32>
    %c104 = arith.constant 104 : index
    %c0_0 = arith.constant 0 : index
    %1 = vector.load %arg1[%c104, %c0_0] : memref<184x256xf32, #tpu.memory_space<vmem>>, vector<1x16xf32>
    %c0_1 = arith.constant 0 : index
    %c0_2 = arith.constant 0 : index
    %2 = vector.load %arg1[%c0_1, %c0_2] : memref<184x256xf32, #tpu.memory_space<vmem>>, vector<16x256xf32>
    %c48 = arith.constant 48 : index
    %c0_3 = arith.constant 0 : index
    %3 = vector.load %arg1[%c48, %c0_3] : memref<184x256xf32, #tpu.memory_space<vmem>>, vector<1x256xf32>
    %c16 = arith.constant 16 : index
    %c0_4 = arith.constant 0 : index
    %4 = vector.load %arg1[%c16, %c0_4] : memref<184x256xf32, #tpu.memory_space<vmem>>, vector<32x128xf32>
    %c0_5 = arith.constant 0 : index
    %c0_6 = arith.constant 0 : index
    %5 = vector.load %arg0[%c0_5, %c0_6] : memref<64x48xf32, #tpu.memory_space<vmem>>, vector<64x48xf32>
    %cst = arith.constant dense<0.000000e+00> : vector<64x16xf32>
    %6 = tpu.matmul %5, %0, %cst {dimension_numbers = #tpu.dot_dimension_numbers<[1], [0], [0], [1], [0, 0, 1, 1], [], []>} : vector<64x48xf32>, vector<48x16xf32>, vector<64x16xf32> -> vector<64x16xf32>
    %7 = vector.broadcast %1 : vector<1x16xf32> to vector<64x16xf32>
    %8 = arith.addf %6, %7 : vector<64x16xf32>
    %cst_7 = arith.constant 0.000000e+00 : f32
    %9 = vector.broadcast %cst_7 : f32 to vector<64x16xf32>
    %10 = arith.maximumf %8, %9 : vector<64x16xf32>
    %cst_8 = arith.constant dense<0.000000e+00> : vector<64x256xf32>
    %11 = tpu.matmul %10, %2, %cst_8 {dimension_numbers = #tpu.dot_dimension_numbers<[1], [0], [0], [1], [0, 0, 1, 1], [], []>} : vector<64x16xf32>, vector<16x256xf32>, vector<64x256xf32> -> vector<64x256xf32>
    %12 = vector.broadcast %3 : vector<1x256xf32> to vector<64x256xf32>
    %13 = arith.addf %11, %12 : vector<64x256xf32>
    %14 = tpu.iota {dimensions = array<i32: 1>} : vector<1x128xi32>
    %c96_i32 = arith.constant 96 : i32
    %15 = vector.broadcast %c96_i32 : i32 to vector<1x128xi32>
    %16 = arith.cmpi slt, %14, %15 : vector<1x128xi32>
    %cst_9 = arith.constant 5.000000e-01 : f32
    %cst_10 = arith.constant 1.000000e+00 : f32
    %17 = vector.broadcast %cst_9 : f32 to vector<1x128xf32>
    %18 = vector.broadcast %cst_10 : f32 to vector<1x128xf32>
    %19 = arith.select %16, %17, %18 : vector<1x128xi1>, vector<1x128xf32>
    %c96_i32_11 = arith.constant 96 : i32
    %20 = vector.broadcast %c96_i32_11 : i32 to vector<1x128xi32>
    %21 = arith.cmpi slt, %14, %20 : vector<1x128xi32>
    %cst_12 = arith.constant 5.000000e-01 : f32
    %cst_13 = arith.constant 1.000000e+00 : f32
    %22 = vector.broadcast %cst_12 : f32 to vector<1x128xf32>
    %23 = vector.broadcast %cst_13 : f32 to vector<1x128xf32>
    %24 = arith.select %21, %22, %23 : vector<1x128xi1>, vector<1x128xf32>
    %c96_i32_14 = arith.constant 96 : i32
    %25 = vector.broadcast %c96_i32_14 : i32 to vector<1x128xi32>
    %26 = arith.cmpi slt, %14, %25 : vector<1x128xi32>
    %cst_15 = arith.constant 5.000000e-01 : f32
    %cst_16 = arith.constant 0.000000e+00 : f32
    %27 = vector.broadcast %cst_15 : f32 to vector<1x128xf32>
    %28 = vector.broadcast %cst_16 : f32 to vector<1x128xf32>
    %29 = arith.select %26, %27, %28 : vector<1x128xi1>, vector<1x128xf32>
    %cst_17 = arith.constant 0.000000e+00 : f32
    %30 = vector.broadcast %cst_17 : f32 to vector<8x32xf32>
    %cst_18 = arith.constant 0.000000e+00 : f32
    %31 = vector.broadcast %cst_18 : f32 to vector<8x32xf32>
    %32 = vector.extract_strided_slice %13 {offsets = [0, 0], sizes = [8, 128], strides = [1, 1]} : vector<64x256xf32> to vector<8x128xf32>
    %cst_19 = arith.constant dense<0.000000e+00> : vector<8x128xf32>
    %33 = tpu.matmul %30, %4, %cst_19 {dimension_numbers = #tpu.dot_dimension_numbers<[1], [0], [0], [1], [0, 0, 1, 1], [], []>} : vector<8x32xf32>, vector<32x128xf32>, vector<8x128xf32> -> vector<8x128xf32>
    %34 = arith.addf %32, %33 : vector<8x128xf32>
    %35 = vector.broadcast %19 : vector<1x128xf32> to vector<8x128xf32>
    %36 = arith.mulf %34, %35 : vector<8x128xf32>
    %37 = math.tanh %36 : vector<8x128xf32>
    %38 = vector.broadcast %24 : vector<1x128xf32> to vector<8x128xf32>
    %39 = arith.mulf %37, %38 : vector<8x128xf32>
    %40 = vector.broadcast %29 : vector<1x128xf32> to vector<8x128xf32>
    %41 = arith.addf %39, %40 : vector<8x128xf32>
    %42 = vector.extract_strided_slice %41 {offsets = [0, 0], sizes = [8, 32], strides = [1, 1]} : vector<8x128xf32> to vector<8x32xf32>
    %43 = vector.extract_strided_slice %41 {offsets = [0, 32], sizes = [8, 32], strides = [1, 1]} : vector<8x128xf32> to vector<8x32xf32>
    %44 = vector.extract_strided_slice %41 {offsets = [0, 64], sizes = [8, 32], strides = [1, 1]} : vector<8x128xf32> to vector<8x32xf32>
    %45 = vector.extract_strided_slice %41 {offsets = [0, 96], sizes = [8, 32], strides = [1, 1]} : vector<8x128xf32> to vector<8x32xf32>
    %46 = arith.mulf %43, %31 : vector<8x32xf32>
    %47 = arith.mulf %42, %45 : vector<8x32xf32>
    %48 = arith.addf %46, %47 : vector<8x32xf32>
    %49 = math.tanh %48 : vector<8x32xf32>
    %50 = arith.mulf %44, %49 : vector<8x32xf32>
    %51 = vector.extract_strided_slice %13 {offsets = [8, 0], sizes = [8, 128], strides = [1, 1]} : vector<64x256xf32> to vector<8x128xf32>
    %cst_20 = arith.constant dense<0.000000e+00> : vector<8x128xf32>
    %52 = tpu.matmul %50, %4, %cst_20 {dimension_numbers = #tpu.dot_dimension_numbers<[1], [0], [0], [1], [0, 0, 1, 1], [], []>} : vector<8x32xf32>, vector<32x128xf32>, vector<8x128xf32> -> vector<8x128xf32>
    %53 = arith.addf %51, %52 : vector<8x128xf32>
    %54 = vector.broadcast %19 : vector<1x128xf32> to vector<8x128xf32>
    %55 = arith.mulf %53, %54 : vector<8x128xf32>
    %56 = math.tanh %55 : vector<8x128xf32>
    %57 = vector.broadcast %24 : vector<1x128xf32> to vector<8x128xf32>
    %58 = arith.mulf %56, %57 : vector<8x128xf32>
    %59 = vector.broadcast %29 : vector<1x128xf32> to vector<8x128xf32>
    %60 = arith.addf %58, %59 : vector<8x128xf32>
    %61 = vector.extract_strided_slice %60 {offsets = [0, 0], sizes = [8, 32], strides = [1, 1]} : vector<8x128xf32> to vector<8x32xf32>
    %62 = vector.extract_strided_slice %60 {offsets = [0, 32], sizes = [8, 32], strides = [1, 1]} : vector<8x128xf32> to vector<8x32xf32>
    %63 = vector.extract_strided_slice %60 {offsets = [0, 64], sizes = [8, 32], strides = [1, 1]} : vector<8x128xf32> to vector<8x32xf32>
    %64 = vector.extract_strided_slice %60 {offsets = [0, 96], sizes = [8, 32], strides = [1, 1]} : vector<8x128xf32> to vector<8x32xf32>
    %65 = arith.mulf %62, %48 : vector<8x32xf32>
    %66 = arith.mulf %61, %64 : vector<8x32xf32>
    %67 = arith.addf %65, %66 : vector<8x32xf32>
    %68 = math.tanh %67 : vector<8x32xf32>
    %69 = arith.mulf %63, %68 : vector<8x32xf32>
    %70 = vector.extract_strided_slice %13 {offsets = [16, 0], sizes = [8, 128], strides = [1, 1]} : vector<64x256xf32> to vector<8x128xf32>
    %cst_21 = arith.constant dense<0.000000e+00> : vector<8x128xf32>
    %71 = tpu.matmul %69, %4, %cst_21 {dimension_numbers = #tpu.dot_dimension_numbers<[1], [0], [0], [1], [0, 0, 1, 1], [], []>} : vector<8x32xf32>, vector<32x128xf32>, vector<8x128xf32> -> vector<8x128xf32>
    %72 = arith.addf %70, %71 : vector<8x128xf32>
    %73 = vector.broadcast %19 : vector<1x128xf32> to vector<8x128xf32>
    %74 = arith.mulf %72, %73 : vector<8x128xf32>
    %75 = math.tanh %74 : vector<8x128xf32>
    %76 = vector.broadcast %24 : vector<1x128xf32> to vector<8x128xf32>
    %77 = arith.mulf %75, %76 : vector<8x128xf32>
    %78 = vector.broadcast %29 : vector<1x128xf32> to vector<8x128xf32>
    %79 = arith.addf %77, %78 : vector<8x128xf32>
    %80 = vector.extract_strided_slice %79 {offsets = [0, 0], sizes = [8, 32], strides = [1, 1]} : vector<8x128xf32> to vector<8x32xf32>
    %81 = vector.extract_strided_slice %79 {offsets = [0, 32], sizes = [8, 32], strides = [1, 1]} : vector<8x128xf32> to vector<8x32xf32>
    %82 = vector.extract_strided_slice %79 {offsets = [0, 64], sizes = [8, 32], strides = [1, 1]} : vector<8x128xf32> to vector<8x32xf32>
    %83 = vector.extract_strided_slice %79 {offsets = [0, 96], sizes = [8, 32], strides = [1, 1]} : vector<8x128xf32> to vector<8x32xf32>
    %84 = arith.mulf %81, %67 : vector<8x32xf32>
    %85 = arith.mulf %80, %83 : vector<8x32xf32>
    %86 = arith.addf %84, %85 : vector<8x32xf32>
    %87 = math.tanh %86 : vector<8x32xf32>
    %88 = arith.mulf %82, %87 : vector<8x32xf32>
    %89 = vector.extract_strided_slice %13 {offsets = [24, 0], sizes = [8, 128], strides = [1, 1]} : vector<64x256xf32> to vector<8x128xf32>
    %cst_22 = arith.constant dense<0.000000e+00> : vector<8x128xf32>
    %90 = tpu.matmul %88, %4, %cst_22 {dimension_numbers = #tpu.dot_dimension_numbers<[1], [0], [0], [1], [0, 0, 1, 1], [], []>} : vector<8x32xf32>, vector<32x128xf32>, vector<8x128xf32> -> vector<8x128xf32>
    %91 = arith.addf %89, %90 : vector<8x128xf32>
    %92 = vector.broadcast %19 : vector<1x128xf32> to vector<8x128xf32>
    %93 = arith.mulf %91, %92 : vector<8x128xf32>
    %94 = math.tanh %93 : vector<8x128xf32>
    %95 = vector.broadcast %24 : vector<1x128xf32> to vector<8x128xf32>
    %96 = arith.mulf %94, %95 : vector<8x128xf32>
    %97 = vector.broadcast %29 : vector<1x128xf32> to vector<8x128xf32>
    %98 = arith.addf %96, %97 : vector<8x128xf32>
    %99 = vector.extract_strided_slice %98 {offsets = [0, 0], sizes = [8, 32], strides = [1, 1]} : vector<8x128xf32> to vector<8x32xf32>
    %100 = vector.extract_strided_slice %98 {offsets = [0, 32], sizes = [8, 32], strides = [1, 1]} : vector<8x128xf32> to vector<8x32xf32>
    %101 = vector.extract_strided_slice %98 {offsets = [0, 64], sizes = [8, 32], strides = [1, 1]} : vector<8x128xf32> to vector<8x32xf32>
    %102 = vector.extract_strided_slice %98 {offsets = [0, 96], sizes = [8, 32], strides = [1, 1]} : vector<8x128xf32> to vector<8x32xf32>
    %103 = arith.mulf %100, %86 : vector<8x32xf32>
    %104 = arith.mulf %99, %102 : vector<8x32xf32>
    %105 = arith.addf %103, %104 : vector<8x32xf32>
    %106 = math.tanh %105 : vector<8x32xf32>
    %107 = arith.mulf %101, %106 : vector<8x32xf32>
    %108 = vector.extract_strided_slice %13 {offsets = [32, 0], sizes = [8, 128], strides = [1, 1]} : vector<64x256xf32> to vector<8x128xf32>
    %cst_23 = arith.constant dense<0.000000e+00> : vector<8x128xf32>
    %109 = tpu.matmul %107, %4, %cst_23 {dimension_numbers = #tpu.dot_dimension_numbers<[1], [0], [0], [1], [0, 0, 1, 1], [], []>} : vector<8x32xf32>, vector<32x128xf32>, vector<8x128xf32> -> vector<8x128xf32>
    %110 = arith.addf %108, %109 : vector<8x128xf32>
    %111 = vector.broadcast %19 : vector<1x128xf32> to vector<8x128xf32>
    %112 = arith.mulf %110, %111 : vector<8x128xf32>
    %113 = math.tanh %112 : vector<8x128xf32>
    %114 = vector.broadcast %24 : vector<1x128xf32> to vector<8x128xf32>
    %115 = arith.mulf %113, %114 : vector<8x128xf32>
    %116 = vector.broadcast %29 : vector<1x128xf32> to vector<8x128xf32>
    %117 = arith.addf %115, %116 : vector<8x128xf32>
    %118 = vector.extract_strided_slice %117 {offsets = [0, 0], sizes = [8, 32], strides = [1, 1]} : vector<8x128xf32> to vector<8x32xf32>
    %119 = vector.extract_strided_slice %117 {offsets = [0, 32], sizes = [8, 32], strides = [1, 1]} : vector<8x128xf32> to vector<8x32xf32>
    %120 = vector.extract_strided_slice %117 {offsets = [0, 64], sizes = [8, 32], strides = [1, 1]} : vector<8x128xf32> to vector<8x32xf32>
    %121 = vector.extract_strided_slice %117 {offsets = [0, 96], sizes = [8, 32], strides = [1, 1]} : vector<8x128xf32> to vector<8x32xf32>
    %122 = arith.mulf %119, %105 : vector<8x32xf32>
    %123 = arith.mulf %118, %121 : vector<8x32xf32>
    %124 = arith.addf %122, %123 : vector<8x32xf32>
    %125 = math.tanh %124 : vector<8x32xf32>
    %126 = arith.mulf %120, %125 : vector<8x32xf32>
    %127 = vector.extract_strided_slice %13 {offsets = [40, 0], sizes = [8, 128], strides = [1, 1]} : vector<64x256xf32> to vector<8x128xf32>
    %cst_24 = arith.constant dense<0.000000e+00> : vector<8x128xf32>
    %128 = tpu.matmul %126, %4, %cst_24 {dimension_numbers = #tpu.dot_dimension_numbers<[1], [0], [0], [1], [0, 0, 1, 1], [], []>} : vector<8x32xf32>, vector<32x128xf32>, vector<8x128xf32> -> vector<8x128xf32>
    %129 = arith.addf %127, %128 : vector<8x128xf32>
    %130 = vector.broadcast %19 : vector<1x128xf32> to vector<8x128xf32>
    %131 = arith.mulf %129, %130 : vector<8x128xf32>
    %132 = math.tanh %131 : vector<8x128xf32>
    %133 = vector.broadcast %24 : vector<1x128xf32> to vector<8x128xf32>
    %134 = arith.mulf %132, %133 : vector<8x128xf32>
    %135 = vector.broadcast %29 : vector<1x128xf32> to vector<8x128xf32>
    %136 = arith.addf %134, %135 : vector<8x128xf32>
    %137 = vector.extract_strided_slice %136 {offsets = [0, 0], sizes = [8, 32], strides = [1, 1]} : vector<8x128xf32> to vector<8x32xf32>
    %138 = vector.extract_strided_slice %136 {offsets = [0, 32], sizes = [8, 32], strides = [1, 1]} : vector<8x128xf32> to vector<8x32xf32>
    %139 = vector.extract_strided_slice %136 {offsets = [0, 64], sizes = [8, 32], strides = [1, 1]} : vector<8x128xf32> to vector<8x32xf32>
    %140 = vector.extract_strided_slice %136 {offsets = [0, 96], sizes = [8, 32], strides = [1, 1]} : vector<8x128xf32> to vector<8x32xf32>
    %141 = arith.mulf %138, %124 : vector<8x32xf32>
    %142 = arith.mulf %137, %140 : vector<8x32xf32>
    %143 = arith.addf %141, %142 : vector<8x32xf32>
    %144 = math.tanh %143 : vector<8x32xf32>
    %145 = arith.mulf %139, %144 : vector<8x32xf32>
    %146 = vector.extract_strided_slice %13 {offsets = [48, 0], sizes = [8, 128], strides = [1, 1]} : vector<64x256xf32> to vector<8x128xf32>
    %cst_25 = arith.constant dense<0.000000e+00> : vector<8x128xf32>
    %147 = tpu.matmul %145, %4, %cst_25 {dimension_numbers = #tpu.dot_dimension_numbers<[1], [0], [0], [1], [0, 0, 1, 1], [], []>} : vector<8x32xf32>, vector<32x128xf32>, vector<8x128xf32> -> vector<8x128xf32>
    %148 = arith.addf %146, %147 : vector<8x128xf32>
    %149 = vector.broadcast %19 : vector<1x128xf32> to vector<8x128xf32>
    %150 = arith.mulf %148, %149 : vector<8x128xf32>
    %151 = math.tanh %150 : vector<8x128xf32>
    %152 = vector.broadcast %24 : vector<1x128xf32> to vector<8x128xf32>
    %153 = arith.mulf %151, %152 : vector<8x128xf32>
    %154 = vector.broadcast %29 : vector<1x128xf32> to vector<8x128xf32>
    %155 = arith.addf %153, %154 : vector<8x128xf32>
    %156 = vector.extract_strided_slice %155 {offsets = [0, 0], sizes = [8, 32], strides = [1, 1]} : vector<8x128xf32> to vector<8x32xf32>
    %157 = vector.extract_strided_slice %155 {offsets = [0, 32], sizes = [8, 32], strides = [1, 1]} : vector<8x128xf32> to vector<8x32xf32>
    %158 = vector.extract_strided_slice %155 {offsets = [0, 64], sizes = [8, 32], strides = [1, 1]} : vector<8x128xf32> to vector<8x32xf32>
    %159 = vector.extract_strided_slice %155 {offsets = [0, 96], sizes = [8, 32], strides = [1, 1]} : vector<8x128xf32> to vector<8x32xf32>
    %160 = arith.mulf %157, %143 : vector<8x32xf32>
    %161 = arith.mulf %156, %159 : vector<8x32xf32>
    %162 = arith.addf %160, %161 : vector<8x32xf32>
    %163 = math.tanh %162 : vector<8x32xf32>
    %164 = arith.mulf %158, %163 : vector<8x32xf32>
    %165 = vector.extract_strided_slice %13 {offsets = [56, 0], sizes = [8, 128], strides = [1, 1]} : vector<64x256xf32> to vector<8x128xf32>
    %cst_26 = arith.constant dense<0.000000e+00> : vector<8x128xf32>
    %166 = tpu.matmul %164, %4, %cst_26 {dimension_numbers = #tpu.dot_dimension_numbers<[1], [0], [0], [1], [0, 0, 1, 1], [], []>} : vector<8x32xf32>, vector<32x128xf32>, vector<8x128xf32> -> vector<8x128xf32>
    %167 = arith.addf %165, %166 : vector<8x128xf32>
    %168 = vector.broadcast %19 : vector<1x128xf32> to vector<8x128xf32>
    %169 = arith.mulf %167, %168 : vector<8x128xf32>
    %170 = math.tanh %169 : vector<8x128xf32>
    %171 = vector.broadcast %24 : vector<1x128xf32> to vector<8x128xf32>
    %172 = arith.mulf %170, %171 : vector<8x128xf32>
    %173 = vector.broadcast %29 : vector<1x128xf32> to vector<8x128xf32>
    %174 = arith.addf %172, %173 : vector<8x128xf32>
    %175 = vector.extract_strided_slice %174 {offsets = [0, 0], sizes = [8, 32], strides = [1, 1]} : vector<8x128xf32> to vector<8x32xf32>
    %176 = vector.extract_strided_slice %174 {offsets = [0, 32], sizes = [8, 32], strides = [1, 1]} : vector<8x128xf32> to vector<8x32xf32>
    %177 = vector.extract_strided_slice %174 {offsets = [0, 64], sizes = [8, 32], strides = [1, 1]} : vector<8x128xf32> to vector<8x32xf32>
    %178 = vector.extract_strided_slice %174 {offsets = [0, 96], sizes = [8, 32], strides = [1, 1]} : vector<8x128xf32> to vector<8x32xf32>
    %179 = arith.mulf %176, %162 : vector<8x32xf32>
    %180 = arith.mulf %175, %178 : vector<8x32xf32>
    %181 = arith.addf %179, %180 : vector<8x32xf32>
    %182 = math.tanh %181 : vector<8x32xf32>
    %183 = arith.mulf %177, %182 : vector<8x32xf32>
    %184 = vector.extract_strided_slice %13 {offsets = [56, 128], sizes = [8, 128], strides = [1, 1]} : vector<64x256xf32> to vector<8x128xf32>
    %cst_27 = arith.constant 0.000000e+00 : f32
    %185 = vector.broadcast %cst_27 : f32 to vector<8x32xf32>
    %186 = vector.broadcast %19 : vector<1x128xf32> to vector<8x128xf32>
    %187 = arith.mulf %184, %186 : vector<8x128xf32>
    %188 = math.tanh %187 : vector<8x128xf32>
    %189 = vector.broadcast %24 : vector<1x128xf32> to vector<8x128xf32>
    %190 = arith.mulf %188, %189 : vector<8x128xf32>
    %191 = vector.broadcast %29 : vector<1x128xf32> to vector<8x128xf32>
    %192 = arith.addf %190, %191 : vector<8x128xf32>
    %193 = vector.extract_strided_slice %192 {offsets = [0, 0], sizes = [8, 32], strides = [1, 1]} : vector<8x128xf32> to vector<8x32xf32>
    %194 = vector.extract_strided_slice %192 {offsets = [0, 32], sizes = [8, 32], strides = [1, 1]} : vector<8x128xf32> to vector<8x32xf32>
    %195 = vector.extract_strided_slice %192 {offsets = [0, 64], sizes = [8, 32], strides = [1, 1]} : vector<8x128xf32> to vector<8x32xf32>
    %196 = vector.extract_strided_slice %192 {offsets = [0, 96], sizes = [8, 32], strides = [1, 1]} : vector<8x128xf32> to vector<8x32xf32>
    %197 = arith.mulf %194, %185 : vector<8x32xf32>
    %198 = arith.mulf %193, %196 : vector<8x32xf32>
    %199 = arith.addf %197, %198 : vector<8x32xf32>
    %200 = math.tanh %199 : vector<8x32xf32>
    %201 = arith.mulf %195, %200 : vector<8x32xf32>
    %cst_28 = arith.constant 0.000000e+00 : f32
    %202 = vector.broadcast %cst_28 : f32 to vector<8x32xf32>
    %203 = arith.maximumf %183, %202 : vector<8x32xf32>
    %cst_29 = arith.constant 0.000000e+00 : f32
    %204 = vector.broadcast %cst_29 : f32 to vector<8x32xf32>
    %205 = arith.maximumf %201, %204 : vector<8x32xf32>
    %c112 = arith.constant 112 : index
    %c0_30 = arith.constant 0 : index
    %206 = vector.load %arg1[%c112, %c0_30] : memref<184x256xf32, #tpu.memory_space<vmem>>, vector<64x128xf32>
    %c176 = arith.constant 176 : index
    %c0_31 = arith.constant 0 : index
    %207 = vector.load %arg1[%c176, %c0_31] : memref<184x256xf32, #tpu.memory_space<vmem>>, vector<1x128xf32>
    %208 = vector.extract_strided_slice %206 {offsets = [0, 0], sizes = [32, 128], strides = [1, 1]} : vector<64x128xf32> to vector<32x128xf32>
    %cst_32 = arith.constant dense<0.000000e+00> : vector<8x128xf32>
    %209 = tpu.matmul %203, %208, %cst_32 {dimension_numbers = #tpu.dot_dimension_numbers<[1], [0], [0], [1], [0, 0, 1, 1], [], []>} : vector<8x32xf32>, vector<32x128xf32>, vector<8x128xf32> -> vector<8x128xf32>
    %210 = vector.extract_strided_slice %206 {offsets = [32, 0], sizes = [32, 128], strides = [1, 1]} : vector<64x128xf32> to vector<32x128xf32>
    %cst_33 = arith.constant dense<0.000000e+00> : vector<8x128xf32>
    %211 = tpu.matmul %205, %210, %cst_33 {dimension_numbers = #tpu.dot_dimension_numbers<[1], [0], [0], [1], [0, 0, 1, 1], [], []>} : vector<8x32xf32>, vector<32x128xf32>, vector<8x128xf32> -> vector<8x128xf32>
    %212 = arith.addf %209, %211 : vector<8x128xf32>
    %213 = vector.broadcast %207 : vector<1x128xf32> to vector<8x128xf32>
    %214 = arith.addf %212, %213 : vector<8x128xf32>
    %c0_34 = arith.constant 0 : index
    %c0_35 = arith.constant 0 : index
    %215 = vector.load %arg2[%c0_34, %c0_35] : memref<8x128xf32, #tpu.memory_space<vmem>>, vector<8x128xf32>
    tpu.vector_store %arg2[%c0_34, %c0_35], %214 {strides = array<i32>} : memref<8x128xf32, #tpu.memory_space<vmem>>, vector<8x128xf32>,
    return
  }
}

</mosaic_0001>

<llo_original>
// kernel: classifier_lstm3_forward.1
$region0: #{classifier_lstm3_forward.1}
  #allocation0 [shape = 'u32[]', space=smem, size = 0x4, offset = 0x4, fixed_abs, tag = 'smem constant byte address 0x4 - core index']
  #allocation1 [shape = 'u32[72,128]{1,0:T(1,128)}', space=vmem, size = 0x9000, scoped, tag = 'internal scratch']
  %s0 = inlined_call_operand.vmem [shape: f32[64,48], index: 0, kind: input, shape index: {}]
  %s1 = inlined_call_operand.hbm [shape: f32[184,256], index: 1, kind: input, shape index: {}]
  %s2 = inlined_call_operand.vmem [shape: f32[8,128], index: 2, kind: output, shape index: {}]
  %s3 = sld [smem:[#allocation0]]
  $region22: #{classifier_lstm3_forward.1} parent=0
    _
  %s5 = ssub.s32 1, %s3
  %s6 = scalar_select 0, %s5, %s3
  $region1: #{classifier_lstm3_forward.1} parent=0
    #allocation2 [shape = 'u8[188416]{0}', space=vmem, size = 0x2e000, scoped, tag = 'input window, operand 1, single buffered']
    #allocation3 [shape = 's32[1]{0}', space=sflag, size = 0x4, scoped, tag = 'scoped memory for classifier_lstm3_forward.1']
    %7 = vsyncpa [#allocation3], 0
    // Predicated region
    $region2: #{classifier_lstm3_forward.1} parent=1 // pred_check
      _
    $region3: #{classifier_lstm3_forward.1} parent=1 // pred_check_branch
      %9 = sbr.rel (0) target = $region5
    $region4: #{classifier_lstm3_forward.1} parent=1 // pred_region
      _
    $region5: #{classifier_lstm3_forward.1} parent=1 // pred_fallthru
      _
    // Predicated region
    $region6: #{classifier_lstm3_forward.1} parent=1 // pred_check
      _
    $region7: #{classifier_lstm3_forward.1} parent=1 // pred_check_branch
      %11 = sbr.rel (0) target = $region9
    $region8: #{classifier_lstm3_forward.1} parent=1 // pred_region
      %13 = vsyncadd [#allocation3], 0
      %s14 = sshll.u32 %s1, 4
      %s15 = int_to_ptr.hbm [resolvable:$true] %s14
      %s16 = sshll.u32 [#allocation2], 4
      %s17 = int_to_ptr.vmem [resolvable:$true] %s16
      %22 = dma.hbm_to_vmem [thread:$0]  %s15, 5888, %s17, [#allocation3], 256, 256, 16
    $region9: #{classifier_lstm3_forward.1} parent=1 // pred_fallthru
      _
    // Predicated region
    $region10: #{classifier_lstm3_forward.1} parent=1 // pred_check
      _
    $region11: #{classifier_lstm3_forward.1} parent=1 // pred_check_branch
      %24 = sbr.rel (0) target = $region13
    $region12: #{classifier_lstm3_forward.1} parent=1 // pred_region
      %26 = dma.done [#allocation3], 5888
    $region13: #{classifier_lstm3_forward.1} parent=1 // pred_fallthru
      _
    %v27 = vld [vmem:[#allocation2 + $0x70] sm:$0xff]
    %v28 = vld [vmem:[#allocation2 + $0x80] sm:$0xff]
    %v29 = vld [vmem:[#allocation2 + $0x90] sm:$0xff]
    %v30 = vld [vmem:[#allocation2 + $0xa0] sm:$0xff]
    %v31 = vld [vmem:[#allocation2 + $0xb0] sm:$0xff]
    %v32 = vld [vmem:[#allocation2 + $0xc0] sm:$0xff]
    %v33 = vld [vmem:[#allocation2 + $0xd0] ss:$0 sm:$0xff]
    %v34 = vld [vmem:[#allocation2] sm:$0xff]
    %v35 = vld [vmem:[#allocation2 + $0x8] sm:$0xff]
    %v36 = vld [vmem:[#allocation2 + $0x10] sm:$0xff]
    %v37 = vld [vmem:[#allocation2 + $0x18] sm:$0xff]
    %s38 = scalar_lea.vmem [#allocation2], 96
    %v39 = vld [vmem:[%s38] ss:$8 sm:$0x3]
    %v40 = vld [vmem:[#allocation2 + $0x20] sm:$0xff]
    %v41 = vld [vmem:[#allocation2 + $0x30] sm:$0xff]
    %v42 = vld [vmem:[#allocation2 + $0x40] sm:$0xff]
    %v43 = vld [vmem:[#allocation2 + $0x50] sm:$0xff]
    %v44 = vld [vmem:[%s0] sm:$0xff]
    %v45 = vld [vmem:[%s0 + $0x8] sm:$0xff]
    %v46 = vld [vmem:[%s0 + $0x10] sm:$0xff]
    %v47 = vld [vmem:[%s0 + $0x18] sm:$0xff]
    %v48 = vld [vmem:[%s0 + $0x20] sm:$0xff]
    %v49 = vld [vmem:[%s0 + $0x28] sm:$0xff]
    %v50 = vld [vmem:[%s0 + $0x30] sm:$0xff]
    %v51 = vld [vmem:[%s0 + $0x38] sm:$0xff]
    %vm52 = vcmask 392192
    %v54 = vsel %vm52, %v44, 0
    %v57 = vsel %vm52, %v45, 0
    %v60 = vsel %vm52, %v46, 0
    %v63 = vsel %vm52, %v47, 0
    %v66 = vsel %vm52, %v48, 0
    %v69 = vsel %vm52, %v49, 0
    %v72 = vsel %vm52, %v50, 0
    %v75 = vsel %vm52, %v51, 0
    %77 = vmatpush.msra.mxu0 0.0
    %78 = vmatpush.msra.mxu0 0.0
    %79 = vmatpush.msra.mxu0 0.0
    %80 = vmatpush.msra.mxu0 0.0
    %81 = vmatpush.msra.mxu0 0.0
    %82 = vmatpush.msra.mxu0 0.0
    %83 = vmatpush.msra.mxu0 0.0
    %84 = vmatpush.msra.mxu0 0.0
    %85 = vmatpush.msra.mxu0 0.0
    %86 = vmatpush.msra.mxu0 0.0
    %87 = vmatpush.msra.mxu0 %v32
    %88 = vmatpush.msra.mxu0 %v31
    %89 = vmatpush.msra.mxu0 %v30
    %90 = vmatpush.msra.mxu0 %v29
    %91 = vmatpush.msra.mxu0 %v28
    %92 = vmatpush.msra.mxu0 %v27
    %93 = vmatmul.f32.gmra.mxu0 %v54
    %v94 = vpop.f32.mrf.mxu0
    %v95 = vadd.f32 %v33, %v94
    %96 = vmatmul.f32.gmra.mxu0 %v57
    %v97 = vpop.f32.mrf.mxu0
    %v98 = vadd.f32 %v33, %v97
    %99 = vmatmul.f32.gmra.mxu0 %v60
    %v100 = vpop.f32.mrf.mxu0
    %v101 = vadd.f32 %v33, %v100
    %102 = vmatmul.f32.gmra.mxu0 %v63
    %v103 = vpop.f32.mrf.mxu0
    %v104 = vadd.f32 %v33, %v103
    %105 = vmatmul.f32.gmra.mxu0 %v66
    %v106 = vpop.f32.mrf.mxu0
    %v107 = vadd.f32 %v33, %v106
    %108 = vmatmul.f32.gmra.mxu0 %v69
    %v109 = vpop.f32.mrf.mxu0
    %v110 = vadd.f32 %v33, %v109
    %111 = vmatmul.f32.gmra.mxu0 %v72
    %v112 = vpop.f32.mrf.mxu0
    %v113 = vadd.f32 %v33, %v112
    %114 = vmatmul.f32.gmra.mxu0 %v75
    %v115 = vpop.f32.mrf.mxu0
    %v116 = vadd.f32 %v33, %v115
    %117 = vdwg.mxu0
    %v118 = vmax.f32 %v95, 0.0
    %v119 = vmax.f32 %v98, 0.0
    %v120 = vmax.f32 %v101, 0.0
    %v121 = vmax.f32 %v104, 0.0
    %v122 = vmax.f32 %v107, 0.0
    %v123 = vmax.f32 %v110, 0.0
    %v124 = vmax.f32 %v113, 0.0
    %v125 = vmax.f32 %v116, 0.0
    %v127 = vperm.slane %v39, 0
    %v128 = vperm.slane %v39, 1
    %vm131 = vcmask 130048
    %v133 = vsel %vm131, %v118, 0
    %v136 = vsel %vm131, %v119, 0
    %v139 = vsel %vm131, %v120, 0
    %v142 = vsel %vm131, %v121, 0
    %v145 = vsel %vm131, %v122, 0
    %v148 = vsel %vm131, %v123, 0
    %v151 = vsel %vm131, %v124, 0
    %v154 = vsel %vm131, %v125, 0
    %156 = vmatpush.msra.mxu0 0.0
    %157 = vmatpush.msra.mxu0 0.0
    %158 = vmatpush.msra.mxu0 0.0
    %159 = vmatpush.msra.mxu0 0.0
    %160 = vmatpush.msra.mxu0 0.0
    %161 = vmatpush.msra.mxu0 0.0
    %162 = vmatpush.msra.mxu0 0.0
    %163 = vmatpush.msra.mxu0 0.0
    %164 = vmatpush.msra.mxu0 0.0
    %165 = vmatpush.msra.mxu0 0.0
    %166 = vmatpush.msra.mxu0 0.0
    %167 = vmatpush.msra.mxu0 0.0
    %168 = vmatpush.msra.mxu0 0.0
    %169 = vmatpush.msra.mxu0 0.0
    %170 = vmatpush.msra.mxu0 %v36
    %171 = vmatpush.msra.mxu0 %v34
    %172 = vmatmul.f32.gmra.mxu0 %v133
    %v173 = vpop.f32.mrf.mxu0
    %v174 = vadd.f32 %v127, %v173
    %175 = vmatmul.f32.gmra.mxu0 %v136
    %v176 = vpop.f32.mrf.mxu0
    %v177 = vadd.f32 %v127, %v176
    %178 = vmatmul.f32.gmra.mxu0 %v139
    %v179 = vpop.f32.mrf.mxu0
    %v180 = vadd.f32 %v127, %v179
    %181 = vmatmul.f32.gmra.mxu0 %v142
    %v182 = vpop.f32.mrf.mxu0
    %v183 = vadd.f32 %v127, %v182
    %184 = vmatmul.f32.gmra.mxu0 %v145
    %v185 = vpop.f32.mrf.mxu0
    %v186 = vadd.f32 %v127, %v185
    %187 = vmatmul.f32.gmra.mxu0 %v148
    %v188 = vpop.f32.mrf.mxu0
    %v189 = vadd.f32 %v127, %v188
    %190 = vmatmul.f32.gmra.mxu0 %v151
    %v191 = vpop.f32.mrf.mxu0
    %v192 = vadd.f32 %v127, %v191
    %193 = vmatmul.f32.gmra.mxu0 %v154
    %v194 = vpop.f32.mrf.mxu0
    %v195 = vadd.f32 %v127, %v194
    %196 = vdwg.mxu0
    %197 = vmatpush.msra.mxu0 0.0
    %198 = vmatpush.msra.mxu0 0.0
    %199 = vmatpush.msra.mxu0 0.0
    %200 = vmatpush.msra.mxu0 0.0
    %201 = vmatpush.msra.mxu0 0.0
    %202 = vmatpush.msra.mxu0 0.0
    %203 = vmatpush.msra.mxu0 0.0
    %204 = vmatpush.msra.mxu0 0.0
    %205 = vmatpush.msra.mxu0 0.0
    %206 = vmatpush.msra.mxu0 0.0
    %207 = vmatpush.msra.mxu0 0.0
    %208 = vmatpush.msra.mxu0 0.0
    %209 = vmatpush.msra.mxu0 0.0
    %210 = vmatpush.msra.mxu0 0.0
    %211 = vmatpush.msra.mxu0 %v37
    %212 = vmatpush.msra.mxu0 %v35
    %213 = vmatmul.f32.gmra.mxu0 %v133
    %v214 = vpop.f32.mrf.mxu0
    %215 = vmatmul.f32.gmra.mxu0 %v136
    %v216 = vpop.f32.mrf.mxu0
    %217 = vmatmul.f32.gmra.mxu0 %v139
    %v218 = vpop.f32.mrf.mxu0
    %219 = vmatmul.f32.gmra.mxu0 %v142
    %v220 = vpop.f32.mrf.mxu0
    %221 = vmatmul.f32.gmra.mxu0 %v145
    %v222 = vpop.f32.mrf.mxu0
    %223 = vmatmul.f32.gmra.mxu0 %v148
    %v224 = vpop.f32.mrf.mxu0
    %225 = vmatmul.f32.gmra.mxu0 %v151
    %v226 = vpop.f32.mrf.mxu0
    %227 = vmatmul.f32.gmra.mxu0 %v154
    %v228 = vpop.f32.mrf.mxu0
    %v229 = vadd.f32 %v128, %v228
    %230 = vdwg.mxu0
    %v231 = vlaneseq
    %v232 = vand.u32 %v231, 127
    %vm233 = vcmp.lt.s32.totalorder %v232, 96
    %v234 = vsel %vm233, 0.5, 1.0
    %v235 = vsel %vm233, 0.5, 0.0
    %vm236 = vcmask 261120
    %v238 = vsel %vm236, 0.0, 0
    %240 = vmatpush.msra.mxu0 0.0
    %241 = vmatpush.msra.mxu0 0.0
    %242 = vmatpush.msra.mxu0 0.0
    %243 = vmatpush.msra.mxu0 0.0
    %244 = vmatpush.msra.mxu0 0.0
    %245 = vmatpush.msra.mxu0 0.0
    %246 = vmatpush.msra.mxu0 0.0
    %247 = vmatpush.msra.mxu0 0.0
    %248 = vmatpush.msra.mxu0 0.0
    %249 = vmatpush.msra.mxu0 0.0
    %250 = vmatpush.msra.mxu0 0.0
    %251 = vmatpush.msra.mxu0 0.0
    %252 = vmatpush.msra.mxu0 %v43
    %253 = vmatpush.msra.mxu0 %v42
    %254 = vmatpush.msra.mxu0 %v41
    %255 = vmatpush.msra.mxu0 %v40
    %256 = vmatmul.f32.gmra.mxu0 %v238
    %v257 = vpop.f32.mrf.mxu0
    %v258 = vadd.f32 0.0, %v257
    %259 = vdwg.mxu0
    %v260 = vadd.f32 %v174, %v258
    %v261 = vmul.f32 %v260, %v234
    %v262 = vtanh.pop %v261
    %v263 = vmul.f32 %v262, %v234
    %v264 = vadd.f32 %v263, %v235
    %v265 = vmul.f32 %v264, 0.0
    %267 = vrot.lane.b32.xlu0 %v264, 32
    %v268 = vpop.permute.xlu0 %267
    %v270 = vmul.f32 %v264, %v268
    %272 = vrot.lane.b32.xlu0 %v270, 32
    %v273 = vpop.permute.xlu0 %272
    %v275 = vadd.f32 %v265, %v273
    %v276 = vtanh.pop %v275
    %278 = vrot.lane.b32.xlu0 %v276, 32
    %v279 = vpop.permute.xlu0 %278
    %v281 = vmul.f32 %v264, %v279
    %283 = vrot.lane.b32.xlu0 %v281, 64
    %v284 = vpop.permute.xlu0 %283
    %v285 = vsel %vm236, %v284, 0
    %287 = vmatpush.msra.mxu0 0.0
    %288 = vmatpush.msra.mxu0 0.0
    %289 = vmatpush.msra.mxu0 0.0
    %290 = vmatpush.msra.mxu0 0.0
    %291 = vmatpush.msra.mxu0 0.0
    %292 = vmatpush.msra.mxu0 0.0
    %293 = vmatpush.msra.mxu0 0.0
    %294 = vmatpush.msra.mxu0 0.0
    %295 = vmatpush.msra.mxu0 0.0
    %296 = vmatpush.msra.mxu0 0.0
    %297 = vmatpush.msra.mxu0 0.0
    %298 = vmatpush.msra.mxu0 0.0
    %299 = vmatpush.msra.mxu0 %v43
    %300 = vmatpush.msra.mxu0 %v42
    %301 = vmatpush.msra.mxu0 %v41
    %302 = vmatpush.msra.mxu0 %v40
    %303 = vmatmul.f32.gmra.mxu0 %v285
    %v304 = vpop.f32.mrf.mxu0
    %v305 = vadd.f32 0.0, %v304
    %306 = vdwg.mxu0
    %v307 = vadd.f32 %v177, %v305
    %v308 = vmul.f32 %v307, %v234
    %v309 = vtanh.pop %v308
    %v310 = vmul.f32 %v309, %v234
    %v311 = vadd.f32 %v310, %v235
    %v312 = vmul.f32 %v311, %v275
    %314 = vrot.lane.b32.xlu0 %v311, 32
    %v315 = vpop.permute.xlu0 %314
    %v317 = vmul.f32 %v311, %v315
    %319 = vrot.lane.b32.xlu0 %v317, 32
    %v320 = vpop.permute.xlu0 %319
    %v322 = vadd.f32 %v312, %v320
    %v323 = vtanh.pop %v322
    %325 = vrot.lane.b32.xlu0 %v323, 32
    %v326 = vpop.permute.xlu0 %325
    %v328 = vmul.f32 %v311, %v326
    %330 = vrot.lane.b32.xlu0 %v328, 64
    %v331 = vpop.permute.xlu0 %330
    %v332 = vsel %vm236, %v331, 0
    %334 = vmatpush.msra.mxu0 0.0
    %335 = vmatpush.msra.mxu0 0.0
    %336 = vmatpush.msra.mxu0 0.0
    %337 = vmatpush.msra.mxu0 0.0
    %338 = vmatpush.msra.mxu0 0.0
    %339 = vmatpush.msra.mxu0 0.0
    %340 = vmatpush.msra.mxu0 0.0
    %341 = vmatpush.msra.mxu0 0.0
    %342 = vmatpush.msra.mxu0 0.0
    %343 = vmatpush.msra.mxu0 0.0
    %344 = vmatpush.msra.mxu0 0.0
    %345 = vmatpush.msra.mxu0 0.0
    %346 = vmatpush.msra.mxu0 %v43
    %347 = vmatpush.msra.mxu0 %v42
    %348 = vmatpush.msra.mxu0 %v41
    %349 = vmatpush.msra.mxu0 %v40
    %350 = vmatmul.f32.gmra.mxu0 %v332
    %v351 = vpop.f32.mrf.mxu0
    %v352 = vadd.f32 0.0, %v351
    %353 = vdwg.mxu0
    %v354 = vadd.f32 %v180, %v352
    %v355 = vmul.f32 %v354, %v234
    %v356 = vtanh.pop %v355
    %v357 = vmul.f32 %v356, %v234
    %v358 = vadd.f32 %v357, %v235
    %v359 = vmul.f32 %v358, %v322
    %361 = vrot.lane.b32.xlu0 %v358, 32
    %v362 = vpop.permute.xlu0 %361
    %v364 = vmul.f32 %v358, %v362
    %366 = vrot.lane.b32.xlu0 %v364, 32
    %v367 = vpop.permute.xlu0 %366
    %v369 = vadd.f32 %v359, %v367
    %v370 = vtanh.pop %v369
    %372 = vrot.lane.b32.xlu0 %v370, 32
    %v373 = vpop.permute.xlu0 %372
    %v375 = vmul.f32 %v358, %v373
    %377 = vrot.lane.b32.xlu0 %v375, 64
    %v378 = vpop.permute.xlu0 %377
    %v379 = vsel %vm236, %v378, 0
    %381 = vmatpush.msra.mxu0 0.0
    %382 = vmatpush.msra.mxu0 0.0
    %383 = vmatpush.msra.mxu0 0.0
    %384 = vmatpush.msra.mxu0 0.0
    %385 = vmatpush.msra.mxu0 0.0
    %386 = vmatpush.msra.mxu0 0.0
    %387 = vmatpush.msra.mxu0 0.0
    %388 = vmatpush.msra.mxu0 0.0
    %389 = vmatpush.msra.mxu0 0.0
    %390 = vmatpush.msra.mxu0 0.0
    %391 = vmatpush.msra.mxu0 0.0
    %392 = vmatpush.msra.mxu0 0.0
    %393 = vmatpush.msra.mxu0 %v43
    %394 = vmatpush.msra.mxu0 %v42
    %395 = vmatpush.msra.mxu0 %v41
    %396 = vmatpush.msra.mxu0 %v40
    %397 = vmatmul.f32.gmra.mxu0 %v379
    %v398 = vpop.f32.mrf.mxu0
    %v399 = vadd.f32 0.0, %v398
    %400 = vdwg.mxu0
    %v401 = vadd.f32 %v183, %v399
    %v402 = vmul.f32 %v401, %v234
    %v403 = vtanh.pop %v402
    %v404 = vmul.f32 %v403, %v234
    %v405 = vadd.f32 %v404, %v235
    %v406 = vmul.f32 %v405, %v369
    %408 = vrot.lane.b32.xlu0 %v405, 32
    %v409 = vpop.permute.xlu0 %408
    %v411 = vmul.f32 %v405, %v409
    %413 = vrot.lane.b32.xlu0 %v411, 32
    %v414 = vpop.permute.xlu0 %413
    %v416 = vadd.f32 %v406, %v414
    %v417 = vtanh.pop %v416
    %419 = vrot.lane.b32.xlu0 %v417, 32
    %v420 = vpop.permute.xlu0 %419
    %v422 = vmul.f32 %v405, %v420
    %424 = vrot.lane.b32.xlu0 %v422, 64
    %v425 = vpop.permute.xlu0 %424
    %v426 = vsel %vm236, %v425, 0
    %428 = vmatpush.msra.mxu0 0.0
    %429 = vmatpush.msra.mxu0 0.0
    %430 = vmatpush.msra.mxu0 0.0
    %431 = vmatpush.msra.mxu0 0.0
    %432 = vmatpush.msra.mxu0 0.0
    %433 = vmatpush.msra.mxu0 0.0
    %434 = vmatpush.msra.mxu0 0.0
    %435 = vmatpush.msra.mxu0 0.0
    %436 = vmatpush.msra.mxu0 0.0
    %437 = vmatpush.msra.mxu0 0.0
    %438 = vmatpush.msra.mxu0 0.0
    %439 = vmatpush.msra.mxu0 0.0
    %440 = vmatpush.msra.mxu0 %v43
    %441 = vmatpush.msra.mxu0 %v42
    %442 = vmatpush.msra.mxu0 %v41
    %443 = vmatpush.msra.mxu0 %v40
    %444 = vmatmul.f32.gmra.mxu0 %v426
    %v445 = vpop.f32.mrf.mxu0
    %v446 = vadd.f32 0.0, %v445
    %447 = vdwg.mxu0
    %v448 = vadd.f32 %v186, %v446
    %v449 = vmul.f32 %v448, %v234
    %v450 = vtanh.pop %v449
    %v451 = vmul.f32 %v450, %v234
    %v452 = vadd.f32 %v451, %v235
    %v453 = vmul.f32 %v452, %v416
    %455 = vrot.lane.b32.xlu0 %v452, 32
    %v456 = vpop.permute.xlu0 %455
    %v458 = vmul.f32 %v452, %v456
    %460 = vrot.lane.b32.xlu0 %v458, 32
    %v461 = vpop.permute.xlu0 %460
    %v463 = vadd.f32 %v453, %v461
    %v464 = vtanh.pop %v463
    %466 = vrot.lane.b32.xlu0 %v464, 32
    %v467 = vpop.permute.xlu0 %466
    %v469 = vmul.f32 %v452, %v467
    %471 = vrot.lane.b32.xlu0 %v469, 64
    %v472 = vpop.permute.xlu0 %471
    %v473 = vsel %vm236, %v472, 0
    %475 = vmatpush.msra.mxu0 0.0
    %476 = vmatpush.msra.mxu0 0.0
    %477 = vmatpush.msra.mxu0 0.0
    %478 = vmatpush.msra.mxu0 0.0
    %479 = vmatpush.msra.mxu0 0.0
    %480 = vmatpush.msra.mxu0 0.0
    %481 = vmatpush.msra.mxu0 0.0
    %482 = vmatpush.msra.mxu0 0.0
    %483 = vmatpush.msra.mxu0 0.0
    %484 = vmatpush.msra.mxu0 0.0
    %485 = vmatpush.msra.mxu0 0.0
    %486 = vmatpush.msra.mxu0 0.0
    %487 = vmatpush.msra.mxu0 %v43
    %488 = vmatpush.msra.mxu0 %v42
    %489 = vmatpush.msra.mxu0 %v41
    %490 = vmatpush.msra.mxu0 %v40
    %491 = vmatmul.f32.gmra.mxu0 %v473
    %v492 = vpop.f32.mrf.mxu0
    %v493 = vadd.f32 0.0, %v492
    %494 = vdwg.mxu0
    %v495 = vadd.f32 %v189, %v493
    %v496 = vmul.f32 %v495, %v234
    %v497 = vtanh.pop %v496
    %v498 = vmul.f32 %v497, %v234
    %v499 = vadd.f32 %v498, %v235
    %v500 = vmul.f32 %v499, %v463
    %502 = vrot.lane.b32.xlu0 %v499, 32
    %v503 = vpop.permute.xlu0 %502
    %v505 = vmul.f32 %v499, %v503
    %507 = vrot.lane.b32.xlu0 %v505, 32
    %v508 = vpop.permute.xlu0 %507
    %v510 = vadd.f32 %v500, %v508
    %v511 = vtanh.pop %v510
    %513 = vrot.lane.b32.xlu0 %v511, 32
    %v514 = vpop.permute.xlu0 %513
    %v516 = vmul.f32 %v499, %v514
    %518 = vrot.lane.b32.xlu0 %v516, 64
    %v519 = vpop.permute.xlu0 %518
    %v520 = vsel %vm236, %v519, 0
    %522 = vmatpush.msra.mxu0 0.0
    %523 = vmatpush.msra.mxu0 0.0
    %524 = vmatpush.msra.mxu0 0.0
    %525 = vmatpush.msra.mxu0 0.0
    %526 = vmatpush.msra.mxu0 0.0
    %527 = vmatpush.msra.mxu0 0.0
    %528 = vmatpush.msra.mxu0 0.0
    %529 = vmatpush.msra.mxu0 0.0
    %530 = vmatpush.msra.mxu0 0.0
    %531 = vmatpush.msra.mxu0 0.0
    %532 = vmatpush.msra.mxu0 0.0
    %533 = vmatpush.msra.mxu0 0.0
    %534 = vmatpush.msra.mxu0 %v43
    %535 = vmatpush.msra.mxu0 %v42
    %536 = vmatpush.msra.mxu0 %v41
    %537 = vmatpush.msra.mxu0 %v40
    %538 = vmatmul.f32.gmra.mxu0 %v520
    %v539 = vpop.f32.mrf.mxu0
    %v540 = vadd.f32 0.0, %v539
    %541 = vdwg.mxu0
    %v542 = vadd.f32 %v192, %v540
    %v543 = vmul.f32 %v542, %v234
    %v544 = vtanh.pop %v543
    %v545 = vmul.f32 %v544, %v234
    %v546 = vadd.f32 %v545, %v235
    %v547 = vmul.f32 %v546, %v510
    %549 = vrot.lane.b32.xlu0 %v546, 32
    %v550 = vpop.permute.xlu0 %549
    %v552 = vmul.f32 %v546, %v550
    %554 = vrot.lane.b32.xlu0 %v552, 32
    %v555 = vpop.permute.xlu0 %554
    %v557 = vadd.f32 %v547, %v555
    %v558 = vtanh.pop %v557
    %560 = vrot.lane.b32.xlu0 %v558, 32
    %v561 = vpop.permute.xlu0 %560
    %v563 = vmul.f32 %v546, %v561
    %565 = vrot.lane.b32.xlu0 %v563, 64
    %v566 = vpop.permute.xlu0 %565
    %v567 = vsel %vm236, %v566, 0
    %569 = vmatpush.msra.mxu0 0.0
    %570 = vmatpush.msra.mxu0 0.0
    %571 = vmatpush.msra.mxu0 0.0
    %572 = vmatpush.msra.mxu0 0.0
    %573 = vmatpush.msra.mxu0 0.0
    %574 = vmatpush.msra.mxu0 0.0
    %575 = vmatpush.msra.mxu0 0.0
    %576 = vmatpush.msra.mxu0 0.0
    %577 = vmatpush.msra.mxu0 0.0
    %578 = vmatpush.msra.mxu0 0.0
    %579 = vmatpush.msra.mxu0 0.0
    %580 = vmatpush.msra.mxu0 0.0
    %581 = vmatpush.msra.mxu0 %v43
    %582 = vmatpush.msra.mxu0 %v42
    %583 = vmatpush.msra.mxu0 %v41
    %584 = vmatpush.msra.mxu0 %v40
    %585 = vmatmul.f32.gmra.mxu0 %v567
    %v586 = vpop.f32.mrf.mxu0
    %v587 = vadd.f32 0.0, %v586
    %588 = vdwg.mxu0
    %v589 = vadd.f32 %v195, %v587
    %v590 = vmul.f32 %v589, %v234
    %v591 = vtanh.pop %v590
    %v592 = vmul.f32 %v591, %v234
    %v593 = vadd.f32 %v592, %v235
    %v594 = vmul.f32 %v593, %v557
    %596 = vrot.lane.b32.xlu0 %v593, 32
    %v597 = vpop.permute.xlu0 %596
    %v599 = vmul.f32 %v593, %v597
    %601 = vrot.lane.b32.xlu0 %v599, 32
    %v602 = vpop.permute.xlu0 %601
    %v604 = vadd.f32 %v594, %v602
    %v605 = vtanh.pop %v604
    %607 = vrot.lane.b32.xlu0 %v605, 32
    %v608 = vpop.permute.xlu0 %607
    %v610 = vmul.f32 %v593, %v608
    %v611 = vmul.f32 %v229, %v234
    %v612 = vtanh.pop %v611
    %v613 = vmul.f32 %v612, %v234
    %v614 = vadd.f32 %v613, %v235
    %v615 = vmul.f32 %v614, 0.0
    %617 = vrot.lane.b32.xlu0 %v614, 32
    %v618 = vpop.permute.xlu0 %617
    %v620 = vmul.f32 %v614, %v618
    %622 = vrot.lane.b32.xlu0 %v620, 32
    %v623 = vpop.permute.xlu0 %622
    %v625 = vadd.f32 %v615, %v623
    %v626 = vtanh.pop %v625
    %628 = vrot.lane.b32.xlu0 %v626, 32
    %v629 = vpop.permute.xlu0 %628
    %v631 = vmul.f32 %v614, %v629
    %v632 = vmax.f32 %v610, 0.0
    %v633 = vmax.f32 %v631, 0.0
    %v634 = vld [vmem:[#allocation2 + $0xe0] sm:$0xff]
    %v635 = vld [vmem:[#allocation2 + $0xf0] sm:$0xff]
    %v636 = vld [vmem:[#allocation2 + $0x100] sm:$0xff]
    %v637 = vld [vmem:[#allocation2 + $0x110] sm:$0xff]
    %v638 = vld [vmem:[#allocation2 + $0x120] sm:$0xff]
    %v639 = vld [vmem:[#allocation2 + $0x130] sm:$0xff]
    %v640 = vld [vmem:[#allocation2 + $0x140] sm:$0xff]
    %v641 = vld [vmem:[#allocation2 + $0x150] sm:$0xff]
    %v642 = vld [vmem:[#allocation2 + $0x160] ss:$0 sm:$0xff]
    %644 = vrot.lane.b32.xlu0 %v633, 64
    %v645 = vpop.permute.xlu0 %644
    %v646 = vsel %vm236, %v645, 0
    %648 = vmatpush.msra.mxu0 0.0
    %649 = vmatpush.msra.mxu0 0.0
    %650 = vmatpush.msra.mxu0 0.0
    %651 = vmatpush.msra.mxu0 0.0
    %652 = vmatpush.msra.mxu0 0.0
    %653 = vmatpush.msra.mxu0 0.0
    %654 = vmatpush.msra.mxu0 0.0
    %655 = vmatpush.msra.mxu0 0.0
    %656 = vmatpush.msra.mxu0 0.0
    %657 = vmatpush.msra.mxu0 0.0
    %658 = vmatpush.msra.mxu0 0.0
    %659 = vmatpush.msra.mxu0 0.0
    %660 = vmatpush.msra.mxu0 %v641
    %661 = vmatpush.msra.mxu0 %v640
    %662 = vmatpush.msra.mxu0 %v639
    %663 = vmatpush.msra.mxu0 %v638
    %664 = vmatmul.f32.gmra.mxu0 %v646
    %v665 = vpop.f32.mrf.mxu0
    %v666 = vadd.f32 0.0, %v665
    %667 = vdwg.mxu0
    %669 = vrot.lane.b32.xlu0 %v632, 64
    %v670 = vpop.permute.xlu0 %669
    %v671 = vsel %vm236, %v670, 0
    %673 = vmatpush.msra.mxu0 0.0
    %674 = vmatpush.msra.mxu0 0.0
    %675 = vmatpush.msra.mxu0 0.0
    %676 = vmatpush.msra.mxu0 0.0
    %677 = vmatpush.msra.mxu0 0.0
    %678 = vmatpush.msra.mxu0 0.0
    %679 = vmatpush.msra.mxu0 0.0
    %680 = vmatpush.msra.mxu0 0.0
    %681 = vmatpush.msra.mxu0 0.0
    %682 = vmatpush.msra.mxu0 0.0
    %683 = vmatpush.msra.mxu0 0.0
    %684 = vmatpush.msra.mxu0 0.0
    %685 = vmatpush.msra.mxu0 %v637
    %686 = vmatpush.msra.mxu0 %v636
    %687 = vmatpush.msra.mxu0 %v635
    %688 = vmatpush.msra.mxu0 %v634
    %689 = vmatmul.f32.gmra.mxu0 %v671
    %v690 = vpop.f32.mrf.mxu0
    %v691 = vadd.f32 %v666, %v690
    %692 = vdwg.mxu0
    %v693 = vadd.f32 %v691, %v642
    %694 = vst [vmem:[%s2] sm:$0xff] %v693
    // Predicated region
    $region14: #{classifier_lstm3_forward.1} parent=1 // pred_check
      _
    $region15: #{classifier_lstm3_forward.1} parent=1 // pred_check_branch
      %696 = sbr.rel (0) target = $region17
    $region16: #{classifier_lstm3_forward.1} parent=1 // pred_region
      _
    $region17: #{classifier_lstm3_forward.1} parent=1 // pred_fallthru
      _
    // Predicated region
    $region18: #{classifier_lstm3_forward.1} parent=1 // pred_check
      _
    $region19: #{classifier_lstm3_forward.1} parent=1 // pred_check_branch
      %698 = sbr.rel (0) target = $region21
    $region20: #{classifier_lstm3_forward.1} parent=1 // pred_region
      _
    $region21: #{classifier_lstm3_forward.1} parent=1 // pred_fallthru
      _
    %699 = vsyncpa [#allocation3], 1

</llo_original>
